<compile_context>
chip_gen: v7x
topology: tpu7x:2x2x1
jax: 0.10.0
libtpu: 0.0.40
codegen_flags: <defaults>
</compile_context>

<pallas_src>
import jax
import jax.numpy as jnp
from jax.experimental import pallas as pl
from jax.experimental.pallas import tpu as pltpu


def _kernel_resident(x_ref, w_ref, b_ref, o_ref):
    # x_ref: (TM, H)   w_ref: (H, H)   b_ref: (1, H)   o_ref: (TM, H)
    x = x_ref[...]
    y = jnp.dot(x, w_ref[...], preferred_element_type=jnp.float32)
    y = y + b_ref[...].astype(jnp.float32) + x.astype(jnp.float32)
    o_ref[...] = y.astype(o_ref.dtype)


def _kernel_ntiled(x_ref, xres_ref, w_ref, b_ref, o_ref):
    # x_ref: (TM, H) full-K rows; w_ref: (H, TN); b_ref: (1, TN);
    # xres_ref / o_ref: (TM, TN) column slab matching this output block.
    y = jnp.dot(x_ref[...], w_ref[...], preferred_element_type=jnp.float32)
    y = y + b_ref[...].astype(jnp.float32) + xres_ref[...].astype(jnp.float32)
    o_ref[...] = y.astype(o_ref.dtype)


def _vmem_capacity_bytes():
    try:
        cap = int(pltpu.get_tpu_info().vmem_capacity_bytes)
        if cap > 0:
            return cap
    except Exception:
        pass
    return 64 << 20  # conservative default: v7x per-TensorCore VMEM


def _select_tiling(m, hp, itemsize, budget, row_align, force_ntiled=False):
    """Returns (tm, tn, resident, vmem_need_bytes)."""
    slack = 4 << 20  # compiler-internal scratch headroom

    m_cap = max(row_align, ((m + row_align - 1) // row_align) * row_align)
    tm_candidates = []
    for t in (512, 256, 128, row_align):
        t = max(row_align, (min(t, m_cap) // row_align) * row_align)
        if t not in tm_candidates:
            tm_candidates.append(t)

    def resident_need(tm):
        return (hp * hp * itemsize           # W resident, single-buffered
                + 2 * tm * hp * itemsize     # x tiles, double-buffered
                + 2 * tm * hp * itemsize     # out tiles, double-buffered
                + hp * itemsize              # bias, single-buffered
                + slack)

    def ntiled_need(tm, tn):
        return (2 * hp * tn * itemsize       # streamed W column blocks, dbl-buf
                + 2 * tm * hp * itemsize     # full-K x tiles, dbl-buf
                + 2 * tm * tn * itemsize     # residual column slabs, dbl-buf
                + 2 * tm * tn * itemsize     # out tiles, dbl-buf
                + 2 * tn * itemsize          # bias blocks
                + slack)

    if not force_ntiled:
        # Prefer W residency; shrink TM (M-dim only) before giving it up.
        for tm in tm_candidates:
            need = resident_need(tm)
            if need <= budget:
                return tm, hp, True, need

    # Streamed-W fallback: N-tiling with full-K matmuls.  tn must divide hp
    # (hp is a multiple of 128, so 128 always works).
    tn_candidates = [t for t in (1024, 512, 256, 128) if t < hp and hp % t == 0]
    if not tn_candidates:
        tn_candidates = [hp]
    for tm in tm_candidates:             # prefer large TM: fewer W re-reads
        for tn in tn_candidates:
            need = ntiled_need(tm, tn)
            if need <= budget:
                return tm, tn, False, need
    tm, tn = tm_candidates[-1], tn_candidates[-1]
    return tm, tn, False, ntiled_need(tm, tn)


def residual_add_linear(x, w, b, *, tm_pref=512, _force_ntiled=False):
    """out = (x @ w + b) + x   with x of shape [batch, seq, hidden]."""
    batch, seq, hidden = x.shape
    m = batch * seq
    x2 = x.reshape(m, hidden)

    # Lane-dense padding only when hidden is not already a multiple of 128.
    hp = max(128, ((hidden + 127) // 128) * 128)
    if hp != hidden:
        x2 = jnp.pad(x2, ((0, 0), (0, hp - hidden)))
        w_p = jnp.pad(w, ((0, hp - hidden), (0, hp - hidden)))
        b_p = jnp.pad(b, (0, hp - hidden))
    else:
        w_p, b_p = w, b
    b2 = b_p.reshape(1, hp)

    itemsize = jnp.dtype(x.dtype).itemsize
    row_align = {4: 8, 2: 16, 1: 32}.get(itemsize, 8)

    vmem_cap = _vmem_capacity_bytes()
    budget = (vmem_cap * 85) // 100
    tm, tn, resident, need = _select_tiling(
        m, hp, itemsize, budget, row_align, force_ntiled=_force_ntiled)
    tm = min(tm, tm_pref) if tm_pref >= row_align else tm
    tm = max(row_align, (tm // row_align) * row_align)

    n_row_tiles = pl.cdiv(m, tm)
    grid = (n_row_tiles, hp // tn)
    vmem_limit = int(min(vmem_cap - (2 << 20), max(need, 32 << 20)))

    w_reads = 1 if resident else n_row_tiles
    xres_reads = 0 if resident else 1
    cost = pl.CostEstimate(
        flops=2 * m * hp * hp,
        transcendentals=0,
        bytes_accessed=((2 + xres_reads) * m * hp + w_reads * hp * hp + hp) * itemsize,
    )
    compiler_params = pltpu.CompilerParams(
        dimension_semantics=("parallel", "parallel"),
        vmem_limit_bytes=vmem_limit,
    )

    if resident:
        # Whole W stays in VMEM across the grid; single-buffer the invariant refs.
        kernel = _kernel_resident
        operands = (x2, w_p, b2)
        in_specs = [
            pl.BlockSpec((tm, hp), lambda i, j: (i, 0)),            # x (pipelined)
            pl.BlockSpec((hp, hp), lambda i, j: (0, j),
                         pipeline_mode=pl.Buffered(1)),              # W resident
            pl.BlockSpec((1, hp), lambda i, j: (0, j),
                         pipeline_mode=pl.Buffered(1)),              # bias resident
        ]
    else:
        # Streamed-W path: W column blocks + matching residual/output slabs.
        kernel = _kernel_ntiled
        operands = (x2, x2, w_p, b2)
        in_specs = [
            pl.BlockSpec((tm, hp), lambda i, j: (i, 0)),             # x full-K rows
            pl.BlockSpec((tm, tn), lambda i, j: (i, j)),             # residual slab
            pl.BlockSpec((hp, tn), lambda i, j: (0, j)),             # W column block
            pl.BlockSpec((1, tn), lambda i, j: (0, j)),              # bias block
        ]
    out_spec = pl.BlockSpec((tm, tn), lambda i, j: (i, j))

    out2 = pl.pallas_call(
        kernel,
        out_shape=jax.ShapeDtypeStruct((m, hp), x.dtype),
        grid_spec=pltpu.PrefetchScalarGridSpec(
            num_scalar_prefetch=0,
            grid=grid,
            in_specs=in_specs,
            out_specs=out_spec,
        ),
        compiler_params=compiler_params,
        cost_estimate=cost,
    )(*operands)

    if hp != hidden:
        out2 = out2[:, :hidden]
    return out2.reshape(batch, seq, hidden)


if __name__ == "__main__":
    key = jax.random.PRNGKey(0)
    k_x, k_w, k_b = jax.random.split(key, 3)

    # fn = Linear(hidden, hidden); ResidualAdd(fn)(x) = fn(x) + x
    batch, seq, hidden = 2, 8, 32
    x = jax.random.normal(k_x, (batch, seq, hidden), dtype=jnp.float32)
    w = jax.random.normal(k_w, (hidden, hidden), dtype=jnp.float32) * 0.05
    b = jax.random.normal(k_b, (hidden,), dtype=jnp.float32) * 0.05

    out = residual_add_linear(x, w, b)
    jax.block_until_ready(out)
    ref = (x @ w + b) + x
    assert jnp.allclose(out, ref, atol=1e-5, rtol=1e-5), "resident path mismatch"

    # Also exercise the streamed-W (N-tiled) fallback path.
    hidden2 = 256
    x_b = jax.random.normal(k_x, (batch, seq, hidden2), dtype=jnp.float32)
    w_b = jax.random.normal(k_w, (hidden2, hidden2), dtype=jnp.float32) * 0.05
    b_b = jax.random.normal(k_b, (hidden2,), dtype=jnp.float32) * 0.05
    out_b = residual_add_linear(x_b, w_b, b_b, _force_ntiled=True)
    jax.block_until_ready(out_b)
    ref_b = (x_b @ w_b + b_b) + x_b
    assert jnp.allclose(out_b, ref_b, atol=2e-4, rtol=2e-4), "n-tiled path mismatch"

    print("KERNEL_OK")
</pallas_src>

<mosaic_0001>
module attributes {stable_mosaic.version = 11 : i64} {
  func.func @_kernel_resident(%arg0: i32, %arg1: i32, %arg2: memref<16x128xf32, #tpu.memory_space<vmem>>, %arg3: memref<128x128xf32, #tpu.memory_space<vmem>>, %arg4: memref<1x128xf32, #tpu.memory_space<vmem>>, %arg5: memref<16x128xf32, #tpu.memory_space<vmem>>) attributes {dimension_semantics = [#tpu.dimension_semantics<parallel>, #tpu.dimension_semantics<parallel>], iteration_bounds = array<i64: 1, 1>, scalar_prefetch = 0 : i64, scratch_operands = 0 : i64, tpu.core_type = #tpu.core_type<tc>, window_params = [{transform_indices = @transform_0, window_bounds = array<i64: 16, 128>}, {pipeline_mode = #tpu.pipeline_mode<synchronous>, transform_indices = @transform_1, window_bounds = array<i64: 128, 128>}, {pipeline_mode = #tpu.pipeline_mode<synchronous>, transform_indices = @transform_2, window_bounds = array<i64: 1, 128>}, {transform_indices = @transform_3, window_bounds = array<i64: 16, 128>}]} {
    %c0 = arith.constant 0 : index
    %c0_0 = arith.constant 0 : index
    %0 = vector.load %arg2[%c0, %c0_0] : memref<16x128xf32, #tpu.memory_space<vmem>>, vector<16x128xf32>
    %c0_1 = arith.constant 0 : index
    %c0_2 = arith.constant 0 : index
    %1 = vector.load %arg3[%c0_1, %c0_2] : memref<128x128xf32, #tpu.memory_space<vmem>>, vector<128x128xf32>
    %cst = arith.constant dense<0.000000e+00> : vector<16x128xf32>
    %2 = tpu.matmul %0, %1, %cst {dimension_numbers = #tpu.dot_dimension_numbers<[1], [0], [0], [1], [0, 0, 1, 1], [], []>} : vector<16x128xf32>, vector<128x128xf32>, vector<16x128xf32> -> vector<16x128xf32>
    %c0_3 = arith.constant 0 : index
    %c0_4 = arith.constant 0 : index
    %3 = vector.load %arg4[%c0_3, %c0_4] : memref<1x128xf32, #tpu.memory_space<vmem>>, vector<1x128xf32>
    %4 = vector.broadcast %3 : vector<1x128xf32> to vector<16x128xf32>
    %5 = arith.addf %2, %4 : vector<16x128xf32>
    %6 = arith.addf %5, %0 : vector<16x128xf32>
    %c0_5 = arith.constant 0 : index
    %c0_6 = arith.constant 0 : index
    %7 = vector.load %arg5[%c0_5, %c0_6] : memref<16x128xf32, #tpu.memory_space<vmem>>, vector<16x128xf32>
    tpu.vector_store %arg5[%c0_5, %c0_6], %6 {strides = array<i32>} : memref<16x128xf32, #tpu.memory_space<vmem>>, vector<16x128xf32>,
    return
  }
  func.func @transform_0(%arg0: i32, %arg1: i32) -> (i32, i32) {
    %c0_i32 = arith.constant 0 : i32
    %c0_i32_0 = arith.constant 0 : i32
    return %arg0, %c0_i32 : i32, i32
  }
  func.func @transform_1(%arg0: i32, %arg1: i32) -> (i32, i32) {
    %c0_i32 = arith.constant 0 : i32
    %c0_i32_0 = arith.constant 0 : i32
    return %c0_i32, %arg1 : i32, i32
  }
  func.func @transform_2(%arg0: i32, %arg1: i32) -> (i32, i32) {
    %c0_i32 = arith.constant 0 : i32
    %c0_i32_0 = arith.constant 0 : i32
    return %c0_i32, %arg1 : i32, i32
  }
  func.func @transform_3(%arg0: i32, %arg1: i32) -> (i32, i32) {
    %c0_i32 = arith.constant 0 : i32
    return %arg0, %arg1 : i32, i32
  }
}

</mosaic_0001>

<llo_original>
// kernel: tpu_custom_call.1
$region0: #{tpu_custom_call.1}
  #allocation0 [shape = 'u32[]', space=smem, size = 0x4, offset = 0x4, fixed_abs, tag = 'smem constant byte address 0x4 - core index']
  #allocation1 [shape = 'u32[144,128]{1,0:T(1,128)}', space=vmem, size = 0x12000, scoped, tag = 'internal scratch']
  %s0 = inlined_call_operand.hbm [shape: f32[16,128], index: 0, kind: input, shape index: {}]
  %s1 = inlined_call_operand.hbm [shape: f32[128,128], index: 1, kind: input, shape index: {}]
  %s2 = inlined_call_operand.vmem [shape: f32[1,128], index: 2, kind: input, shape index: {}]
  %s3 = inlined_call_operand.hbm [shape: f32[16,128], index: 3, kind: output, shape index: {}]
  %s4 = sld [smem:[#allocation0]]
  $region30: #{tpu_custom_call.1} parent=0
    _
  %s6 = ssub.s32 1, %s4
  %s7 = scalar_select 0, %s6, %s4
  $region1: #{tpu_custom_call.1} parent=0
    #allocation2 [shape = 'u8[8192]{0}', space=vmem, size = 0x2000, scoped, tag = 'input window, operand 0, single buffered']
    #allocation3 [shape = 's32[1]{0}', space=sflag, size = 0x4, scoped, tag = 'scoped memory for tpu_custom_call.1']
    #allocation4 [shape = 's32[1]{0}', space=sflag, size = 0x4, scoped, tag = 'scoped memory for tpu_custom_call.1']
    #allocation5 [shape = 'u8[65536]{0}', space=vmem, size = 0x10000, scoped, tag = 'input window, operand 1, single buffered']
    #allocation6 [shape = 's32[1]{0}', space=sflag, size = 0x4, scoped, tag = 'scoped memory for tpu_custom_call.1']
    #allocation7 [shape = 'u8[8192]{0}', space=vmem, size = 0x2000, scoped, tag = 'output window, operand 0, single buffered']
    %8 = vsyncpa [#allocation3], 0
    %9 = vsyncpa [#allocation6], 0
    %10 = vsyncpa [#allocation4], 0
    // Predicated region
    $region2: #{tpu_custom_call.1} parent=1 // pred_check
      _
    $region3: #{tpu_custom_call.1} parent=1 // pred_check_branch
      %12 = sbr.rel (0) target = $region5
    $region4: #{tpu_custom_call.1} parent=1 // pred_region
      %s14 = ssub.s32 256, 256
      %15 = vsyncadd [#allocation3], %s14
      %s16 = sshll.u32 [#allocation2], 4
      %s17 = int_to_ptr.vmem [resolvable:$true] %s16
      %22 = dma.hbm_to_vmem [thread:$0]  %s0, 256, %s17, [#allocation3], 128, 128, 8
    $region5: #{tpu_custom_call.1} parent=1 // pred_fallthru
      _
    // Predicated region
    $region6: #{tpu_custom_call.1} parent=1 // pred_check
      _
    $region7: #{tpu_custom_call.1} parent=1 // pred_check_branch
      %24 = sbr.rel (0) target = $region9
    $region8: #{tpu_custom_call.1} parent=1 // pred_region
      %s26 = ssub.s32 2048, 2048
      %27 = vsyncadd [#allocation6], %s26
      %s28 = sshll.u32 [#allocation5], 4
      %s29 = int_to_ptr.vmem [resolvable:$true] %s28
      %34 = dma.hbm_to_vmem [thread:$0]  %s1, 2048, %s29, [#allocation6], 128, 128, 8
    $region9: #{tpu_custom_call.1} parent=1 // pred_fallthru
      _
    // Predicated region
    $region10: #{tpu_custom_call.1} parent=1 // pred_check
      _
    $region11: #{tpu_custom_call.1} parent=1 // pred_check_branch
      %36 = sbr.rel (0) target = $region13
    $region12: #{tpu_custom_call.1} parent=1 // pred_region
      _
    $region13: #{tpu_custom_call.1} parent=1 // pred_fallthru
      _
    // Predicated region
    $region14: #{tpu_custom_call.1} parent=1 // pred_check
      _
    $region15: #{tpu_custom_call.1} parent=1 // pred_check_branch
      %38 = sbr.rel (0) target = $region17
    $region16: #{tpu_custom_call.1} parent=1 // pred_region
      %39 = dma.done [#allocation3], 256
    $region17: #{tpu_custom_call.1} parent=1 // pred_fallthru
      _
    // Predicated region
    $region18: #{tpu_custom_call.1} parent=1 // pred_check
      _
    $region19: #{tpu_custom_call.1} parent=1 // pred_check_branch
      %41 = sbr.rel (0) target = $region21
    $region20: #{tpu_custom_call.1} parent=1 // pred_region
      %42 = dma.done [#allocation6], 2048
    $region21: #{tpu_custom_call.1} parent=1 // pred_fallthru
      _
    %v43 = vld [vmem:[#allocation2] sm:$0xff]
    %v44 = vld [vmem:[#allocation2 + $0x8] sm:$0xff]
    %v45 = vld [vmem:[#allocation5] sm:$0xff]
    %v46 = vld [vmem:[#allocation5 + $0x8] sm:$0xff]
    %v47 = vld [vmem:[#allocation5 + $0x10] sm:$0xff]
    %v48 = vld [vmem:[#allocation5 + $0x18] sm:$0xff]
    %v49 = vld [vmem:[#allocation5 + $0x20] sm:$0xff]
    %v50 = vld [vmem:[#allocation5 + $0x28] sm:$0xff]
    %v51 = vld [vmem:[#allocation5 + $0x30] sm:$0xff]
    %v52 = vld [vmem:[#allocation5 + $0x38] sm:$0xff]
    %v53 = vld [vmem:[#allocation5 + $0x40] sm:$0xff]
    %v54 = vld [vmem:[#allocation5 + $0x48] sm:$0xff]
    %v55 = vld [vmem:[#allocation5 + $0x50] sm:$0xff]
    %v56 = vld [vmem:[#allocation5 + $0x58] sm:$0xff]
    %v57 = vld [vmem:[#allocation5 + $0x60] sm:$0xff]
    %v58 = vld [vmem:[#allocation5 + $0x68] sm:$0xff]
    %v59 = vld [vmem:[#allocation5 + $0x70] sm:$0xff]
    %v60 = vld [vmem:[#allocation5 + $0x78] sm:$0xff]
    %v61 = vld [vmem:[%s2] sm:$0x1]
    %v63 = vlaneseq
    %v64 = vshrl.u32 %v63, 7
    %v65 = vsub.s32 0, %v64
    %v66 = vrot.slane %v61, %v65
    %68 = vmatprep.subr.mxu0 0.0
    %69 = vmatpush1.msra.mxu0 %v45
    %70 = vmatprep.subr.mxu0 0.0
    %71 = vmatpush1.msra.mxu0 %v46
    %72 = vmatprep.subr.mxu0 0.0
    %73 = vmatpush1.msra.mxu0 %v47
    %74 = vmatprep.subr.mxu0 0.0
    %75 = vmatpush1.msra.mxu0 %v48
    %76 = vmatprep.subr.mxu0 0.0
    %77 = vmatpush1.msra.mxu0 %v49
    %78 = vmatprep.subr.mxu0 0.0
    %79 = vmatpush1.msra.mxu0 %v50
    %80 = vmatprep.subr.mxu0 0.0
    %81 = vmatpush1.msra.mxu0 %v51
    %82 = vmatprep.subr.mxu0 0.0
    %83 = vmatpush1.msra.mxu0 %v52
    %84 = vmatprep.subr.mxu0 0.0
    %85 = vmatpush1.msra.mxu0 %v53
    %86 = vmatprep.subr.mxu0 0.0
    %87 = vmatpush1.msra.mxu0 %v54
    %88 = vmatprep.subr.mxu0 0.0
    %89 = vmatpush1.msra.mxu0 %v55
    %90 = vmatprep.subr.mxu0 0.0
    %91 = vmatpush1.msra.mxu0 %v56
    %92 = vmatprep.subr.mxu0 0.0
    %93 = vmatpush1.msra.mxu0 %v57
    %94 = vmatprep.subr.mxu0 0.0
    %95 = vmatpush1.msra.mxu0 %v58
    %96 = vmatprep.subr.mxu0 0.0
    %97 = vmatpush1.msra.mxu0 %v59
    %98 = vmatprep.subr.mxu0 0.0
    %99 = vmatpush1.msra.mxu0 %v60
    %100 = vmatprep.subr.mxu0 0.0
    %101 = vmatpush1.msra.mxu0 0.0
    %102 = vmatprep.subr.mxu0 0.0
    %103 = vmatpush1.msra.mxu0 0.0
    %104 = vmatprep.subr.mxu0 0.0
    %105 = vmatpush1.msra.mxu0 0.0
    %106 = vmatprep.subr.mxu0 0.0
    %107 = vmatpush1.msra.mxu0 0.0
    %108 = vmatprep.subr.mxu0 0.0
    %109 = vmatpush1.msra.mxu0 0.0
    %110 = vmatprep.subr.mxu0 0.0
    %111 = vmatpush1.msra.mxu0 0.0
    %112 = vmatprep.subr.mxu0 0.0
    %113 = vmatpush1.msra.mxu0 0.0
    %114 = vmatprep.subr.mxu0 0.0
    %115 = vmatpush1.msra.mxu0 0.0
    %116 = vmatprep.subr.mxu0 0.0
    %117 = vmatpush1.msra.mxu0 0.0
    %118 = vmatprep.subr.mxu0 0.0
    %119 = vmatpush1.msra.mxu0 0.0
    %120 = vmatprep.subr.mxu0 0.0
    %121 = vmatpush1.msra.mxu0 0.0
    %122 = vmatprep.subr.mxu0 0.0
    %123 = vmatpush1.msra.mxu0 0.0
    %124 = vmatprep.subr.mxu0 0.0
    %125 = vmatpush1.msra.mxu0 0.0
    %126 = vmatprep.subr.mxu0 0.0
    %127 = vmatpush1.msra.mxu0 0.0
    %128 = vmatprep.subr.mxu0 0.0
    %129 = vmatpush1.msra.mxu0 0.0
    %130 = vmatprep.subr.mxu0 0.0
    %131 = vmatpush1.msra.mxu0 0.0
    %132 = vmatprep.mubr.f32.mxu0 0.0
    %133 = vmatmul.mubr.f32.gmra.mrb[0].mxu0 %v43
    %v134 = vpop.f32.mrb[0].mxu0
    %v135 = vadd.f32 %v66, %v134
    %v136 = vpop.f32.mrb[0].mxu0
    %137 = vmatprep.mubr.f32.mxu0 0.0
    %138 = vmatmul.mubr.f32.gmra.mrb[0].mxu0 %v44
    %v139 = vpop.f32.mrb[0].mxu0
    %v140 = vadd.f32 %v66, %v139
    %v141 = vpop.f32.mrb[0].mxu0
    %142 = vdwg.mxu0
    %v143 = vadd.f32 %v135, %v43
    %v144 = vadd.f32 %v140, %v44
    %145 = vst [vmem:[#allocation7] sm:$0xff] %v143
    %146 = vst [vmem:[#allocation7 + $0x8] sm:$0xff] %v144
    // Predicated region
    $region22: #{tpu_custom_call.1} parent=1 // pred_check
      _
    $region23: #{tpu_custom_call.1} parent=1 // pred_check_branch
      %148 = sbr.rel (0) target = $region25
    $region24: #{tpu_custom_call.1} parent=1 // pred_region
      %s150 = ssub.s32 256, 256
      %151 = vsyncadd [#allocation4], %s150
      %s152 = sshll.u32 [#allocation7], 4
      %s153 = int_to_ptr.vmem [resolvable:$true] %s152
      %158 = dma.vmem_to_hbm [thread:$0]  %s153, 256, %s3, [#allocation4], 128, 128, 8
    $region25: #{tpu_custom_call.1} parent=1 // pred_fallthru
      _
    // Predicated region
    $region26: #{tpu_custom_call.1} parent=1 // pred_check
      _
    $region27: #{tpu_custom_call.1} parent=1 // pred_check_branch
      %160 = sbr.rel (0) target = $region29
    $region28: #{tpu_custom_call.1} parent=1 // pred_region
      %161 = dma.done [#allocation4], 256
    $region29: #{tpu_custom_call.1} parent=1 // pred_fallthru
      _
    %162 = vsyncpa [#allocation3], 1
    %163 = vsyncpa [#allocation6], 1
    %164 = vsyncpa [#allocation4], 1

</llo_original>
